<compile_context>
chip_gen: v7x
topology: tpu7x:2x2x1
jax: 0.10.0
libtpu: 0.0.40
codegen_flags: <defaults>
</compile_context>

<pallas_src>
import functools

import jax
import jax.numpy as jnp
from jax.experimental import pallas as pl
from jax.experimental.pallas import tpu as pltpu

C_IN = 18
C_OUT = 256
KH = KW = 5
H = W = 8
PAD = 2
EPS = 1e-5

K_RAW = C_IN * KH * KW          # 450
K_PAD = 512                     # contraction dim padded to a multiple of 128


# ---------------------------------------------------------------------------
# Phase 1: conv matmul + per-tile partial BN statistics
# ---------------------------------------------------------------------------
def conv_stats_kernel(p_ref, w_ref, conv_ref, stats_ref):
    # p_ref: (TM, K_PAD) bf16   w_ref: (K_PAD, C_OUT) bf16
    # conv_ref: (TM, C_OUT) f32 stats_ref: (8, C_OUT) f32 (rows 0=sum, 1=sumsq)
    acc = jnp.dot(p_ref[...], w_ref[...], preferred_element_type=jnp.float32)
    conv_ref[...] = acc

    s = jnp.sum(acc, axis=0, keepdims=True)            # (1, C_OUT)
    ss = jnp.sum(acc * acc, axis=0, keepdims=True)     # (1, C_OUT)
    row = jax.lax.broadcasted_iota(jnp.int32, (8, C_OUT), 0)
    zeros = jnp.zeros((8, C_OUT), jnp.float32)
    stats_ref[...] = jnp.where(row == 0, s, jnp.where(row == 1, ss, zeros))


# ---------------------------------------------------------------------------
# Phase 2: apply BN (scale/shift precomputed on host) + ReLU
# ---------------------------------------------------------------------------
def bn_relu_kernel(x_ref, scale_ref, shift_ref, o_ref):
    o_ref[...] = jnp.maximum(x_ref[...] * scale_ref[...] + shift_ref[...], 0.0)


def _im2col_bf16(x):
    """x: (N, C_IN, H, W) NCHW float -> patches (N*H*W, K_PAD) bfloat16."""
    n = x.shape[0]
    xb = x.astype(jnp.bfloat16)
    xp = jnp.pad(xb, ((0, 0), (0, 0), (PAD, PAD), (PAD, PAD)))
    # 25 shifted views, stacked: (N, C_IN, 25, H, W)
    views = [xp[:, :, i:i + H, j:j + W] for i in range(KH) for j in range(KW)]
    patches = jnp.stack(views, axis=2)
    patches = patches.reshape(n, K_RAW, H * W).transpose(0, 2, 1)
    patches = patches.reshape(n * H * W, K_RAW)
    return jnp.pad(patches, ((0, 0), (0, K_PAD - K_RAW)))


def _choose_tm(m):
    # multiple of 128 rows (MXU / sublane aligned), capped for VMEM on all gens
    for tm in (1024, 512, 256, 128):
        if m >= tm:
            return tm
    return 128


@jax.jit
def conv_block_forward(x, conv_w, conv_b, bn_gamma, bn_beta):
    """x: (..., 18, 8, 8) -> (N, 256, 8, 8), matching ConvBlock.forward."""
    del conv_b  # cancels exactly under training-mode BatchNorm mean subtraction

    x = x.reshape(-1, C_IN, H, W)
    n = x.shape[0]
    m = n * H * W

    tm = _choose_tm(m)
    num_tiles = pl.cdiv(m, tm)
    m_pad = num_tiles * tm

    patches = _im2col_bf16(x)                                  # (m, K_PAD) bf16
    if m_pad != m:
        patches = jnp.pad(patches, ((0, m_pad - m), (0, 0)))   # zero rows: no-op for stats

    # conv weight (256, 18, 5, 5) -> (450, 256) -> (K_PAD, 256) bf16
    w_mat = conv_w.reshape(C_OUT, K_RAW).T
    w_mat = jnp.pad(w_mat, ((0, K_PAD - K_RAW), (0, 0))).astype(jnp.bfloat16)

    conv_out, stats = pl.pallas_call(
        conv_stats_kernel,
        out_shape=(
            jax.ShapeDtypeStruct((m_pad, C_OUT), jnp.float32),
            jax.ShapeDtypeStruct((num_tiles * 8, C_OUT), jnp.float32),
        ),
        grid=(num_tiles,),
        in_specs=[
            pl.BlockSpec((tm, K_PAD), lambda i: (i, 0)),
            pl.BlockSpec((K_PAD, C_OUT), lambda i: (0, 0)),   # weights VMEM-resident
        ],
        out_specs=(
            pl.BlockSpec((tm, C_OUT), lambda i: (i, 0)),
            pl.BlockSpec((8, C_OUT), lambda i: (i, 0)),
        ),
        compiler_params=pltpu.CompilerParams(
            dimension_semantics=("parallel",)),
    )(patches, w_mat)

    # Combine per-tile partial statistics (tiny (num_tiles, 256) reduction).
    stats = stats.reshape(num_tiles, 8, C_OUT)
    total_sum = jnp.sum(stats[:, 0, :], axis=0)
    total_sq = jnp.sum(stats[:, 1, :], axis=0)
    inv_m = 1.0 / m
    mean = total_sum * inv_m
    var = total_sq * inv_m - mean * mean                      # biased, like PyTorch train-mode
    inv_std = jax.lax.rsqrt(var + EPS)
    scale_v = bn_gamma.astype(jnp.float32) * inv_std          # gamma folded into 1/std
    shift_v = bn_beta.astype(jnp.float32) - mean * scale_v
    scale = scale_v.reshape(1, C_OUT)
    shift = shift_v.reshape(1, C_OUT)

    out_flat = pl.pallas_call(
        bn_relu_kernel,
        out_shape=jax.ShapeDtypeStruct((m_pad, C_OUT), jnp.float32),
        grid=(num_tiles,),
        in_specs=[
            pl.BlockSpec((tm, C_OUT), lambda i: (i, 0)),
            pl.BlockSpec((1, C_OUT), lambda i: (0, 0)),
            pl.BlockSpec((1, C_OUT), lambda i: (0, 0)),
        ],
        out_specs=pl.BlockSpec((tm, C_OUT), lambda i: (i, 0)),
        compiler_params=pltpu.CompilerParams(
            dimension_semantics=("parallel",)),
    )(conv_out, scale, shift)

    # (N*H*W, C_OUT) -> (N, H, W, C_OUT) -> NCHW
    return out_flat[:m].reshape(n, H, W, C_OUT).transpose(0, 3, 1, 2)


def _reference(x, conv_w, conv_b, bn_gamma, bn_beta):
    x = x.reshape(-1, C_IN, H, W).astype(jnp.float32)
    y = jax.lax.conv_general_dilated(
        x, conv_w.astype(jnp.float32), window_strides=(1, 1),
        padding=((PAD, PAD), (PAD, PAD)),
        dimension_numbers=("NCHW", "OIHW", "NCHW"))
    y = y + conv_b.reshape(1, C_OUT, 1, 1)
    mean = jnp.mean(y, axis=(0, 2, 3), keepdims=True)
    var = jnp.mean((y - mean) ** 2, axis=(0, 2, 3), keepdims=True)
    yhat = (y - mean) * jax.lax.rsqrt(var + EPS)
    yhat = yhat * bn_gamma.reshape(1, C_OUT, 1, 1) + bn_beta.reshape(1, C_OUT, 1, 1)
    return jnp.maximum(yhat, 0.0)


if __name__ == "__main__":
    key = jax.random.PRNGKey(0)
    k_x, k_w, k_b, k_g, k_beta = jax.random.split(key, 5)

    # Small deterministic example: batch=2, input (2, 18, 8, 8)
    x = jax.random.normal(k_x, (2, C_IN, H, W), dtype=jnp.float32)

    # Deterministic synthetic parameters (shapes from nn.Conv2d / nn.BatchNorm2d)
    conv_w = 0.05 * jax.random.normal(k_w, (C_OUT, C_IN, KH, KW), dtype=jnp.float32)
    conv_b = 0.05 * jax.random.normal(k_b, (C_OUT,), dtype=jnp.float32)
    bn_gamma = 1.0 + 0.1 * jax.random.normal(k_g, (C_OUT,), dtype=jnp.float32)
    bn_beta = 0.1 * jax.random.normal(k_beta, (C_OUT,), dtype=jnp.float32)

    out = conv_block_forward(x, conv_w, conv_b, bn_gamma, bn_beta)
    out = jax.block_until_ready(out)

    ref = jax.block_until_ready(_reference(x, conv_w, conv_b, bn_gamma, bn_beta))
    assert out.shape == (2, C_OUT, H, W), out.shape
    assert jnp.allclose(out, ref, atol=2e-2, rtol=2e-2), float(jnp.max(jnp.abs(out - ref)))

    print("KERNEL_OK")
</pallas_src>

<mosaic_0001>
module attributes {stable_mosaic.version = 11 : i64} {
  func.func @conv_stats_kernel(%arg0: i32, %arg1: memref<128x512xbf16, #tpu.memory_space<vmem>>, %arg2: memref<512x256xbf16, #tpu.memory_space<vmem>>, %arg3: memref<128x256xf32, #tpu.memory_space<vmem>>, %arg4: memref<8x256xf32, #tpu.memory_space<vmem>>) attributes {dimension_semantics = [#tpu.dimension_semantics<parallel>], iteration_bounds = array<i64: 1>, scalar_prefetch = 0 : i64, scratch_operands = 0 : i64, tpu.core_type = #tpu.core_type<tc>, window_params = [{transform_indices = @transform_0, window_bounds = array<i64: 128, 512>}, {pipeline_mode = #tpu.pipeline_mode<synchronous>, transform_indices = @transform_1, window_bounds = array<i64: 512, 256>}, {transform_indices = @transform_2, window_bounds = array<i64: 128, 256>}, {transform_indices = @transform_3, window_bounds = array<i64: 8, 256>}]} {
    %c0 = arith.constant 0 : index
    %c0_0 = arith.constant 0 : index
    %0 = vector.load %arg1[%c0, %c0_0] : memref<128x512xbf16, #tpu.memory_space<vmem>>, vector<128x512xbf16>
    %c0_1 = arith.constant 0 : index
    %c0_2 = arith.constant 0 : index
    %1 = vector.load %arg2[%c0_1, %c0_2] : memref<512x256xbf16, #tpu.memory_space<vmem>>, vector<512x256xbf16>
    %cst = arith.constant dense<0.000000e+00> : vector<128x256xf32>
    %2 = tpu.matmul %0, %1, %cst {dimension_numbers = #tpu.dot_dimension_numbers<[1], [0], [0], [1], [0, 0, 1, 1], [], []>} : vector<128x512xbf16>, vector<512x256xbf16>, vector<128x256xf32> -> vector<128x256xf32>
    %c0_3 = arith.constant 0 : index
    %c0_4 = arith.constant 0 : index
    %3 = vector.load %arg3[%c0_3, %c0_4] : memref<128x256xf32, #tpu.memory_space<vmem>>, vector<128x256xf32>
    tpu.vector_store %arg3[%c0_3, %c0_4], %2 {strides = array<i32>} : memref<128x256xf32, #tpu.memory_space<vmem>>, vector<128x256xf32>,
    %cst_5 = arith.constant dense<0.000000e+00> : vector<256xf32>
    %4 = vector.multi_reduction <add>, %2, %cst_5 [0] : vector<128x256xf32> to vector<256xf32>
    %5 = vector.shape_cast %4 : vector<256xf32> to vector<1x256xf32>
    %6 = arith.mulf %2, %2 : vector<128x256xf32>
    %cst_6 = arith.constant dense<0.000000e+00> : vector<256xf32>
    %7 = vector.multi_reduction <add>, %6, %cst_6 [0] : vector<128x256xf32> to vector<256xf32>
    %8 = vector.shape_cast %7 : vector<256xf32> to vector<1x256xf32>
    %9 = tpu.iota {dimensions = array<i32: 0>} : vector<8x256xi32>
    %cst_7 = arith.constant 0.000000e+00 : f32
    %10 = vector.broadcast %cst_7 : f32 to vector<8x256xf32>
    %c0_i32 = arith.constant 0 : i32
    %11 = vector.broadcast %c0_i32 : i32 to vector<8x256xi32>
    %12 = arith.cmpi eq, %9, %11 : vector<8x256xi32>
    %c1_i32 = arith.constant 1 : i32
    %13 = vector.broadcast %c1_i32 : i32 to vector<8x256xi32>
    %14 = arith.cmpi eq, %9, %13 : vector<8x256xi32>
    %15 = vector.shape_cast %8 : vector<1x256xf32> to vector<1x256xf32>
    %16 = vector.broadcast %15 : vector<1x256xf32> to vector<8x256xf32>
    %17 = arith.select %14, %16, %10 : vector<8x256xi1>, vector<8x256xf32>
    %18 = vector.shape_cast %5 : vector<1x256xf32> to vector<1x256xf32>
    %19 = vector.broadcast %18 : vector<1x256xf32> to vector<8x256xf32>
    %20 = arith.select %12, %19, %17 : vector<8x256xi1>, vector<8x256xf32>
    %c0_8 = arith.constant 0 : index
    %c0_9 = arith.constant 0 : index
    %21 = vector.load %arg4[%c0_8, %c0_9] : memref<8x256xf32, #tpu.memory_space<vmem>>, vector<8x256xf32>
    tpu.vector_store %arg4[%c0_8, %c0_9], %20 {strides = array<i32>} : memref<8x256xf32, #tpu.memory_space<vmem>>, vector<8x256xf32>,
    return
  }
  func.func @transform_0(%arg0: i32) -> (i32, i32) {
    %c0_i32 = arith.constant 0 : i32
    %c0_i32_0 = arith.constant 0 : i32
    return %arg0, %c0_i32 : i32, i32
  }
  func.func @transform_1(%arg0: i32) -> (i32, i32) {
    %c0_i32 = arith.constant 0 : i32
    %c0_i32_0 = arith.constant 0 : i32
    %c0_i32_1 = arith.constant 0 : i32
    return %c0_i32, %c0_i32_0 : i32, i32
  }
  func.func @transform_2(%arg0: i32) -> (i32, i32) {
    %c0_i32 = arith.constant 0 : i32
    %c0_i32_0 = arith.constant 0 : i32
    return %arg0, %c0_i32 : i32, i32
  }
  func.func @transform_3(%arg0: i32) -> (i32, i32) {
    %c0_i32 = arith.constant 0 : i32
    %c0_i32_0 = arith.constant 0 : i32
    return %arg0, %c0_i32 : i32, i32
  }
}

module attributes {stable_mosaic.version = 11 : i64} {
  func.func @bn_relu_kernel(%arg0: i32, %arg1: memref<128x256xf32, #tpu.memory_space<vmem>>, %arg2: memref<1x256xf32, #tpu.memory_space<vmem>>, %arg3: memref<1x256xf32, #tpu.memory_space<vmem>>, %arg4: memref<128x256xf32, #tpu.memory_space<vmem>>) attributes {dimension_semantics = [#tpu.dimension_semantics<parallel>], iteration_bounds = array<i64: 1>, scalar_prefetch = 0 : i64, scratch_operands = 0 : i64, tpu.core_type = #tpu.core_type<tc>, window_params = [{transform_indices = @transform_0, window_bounds = array<i64: 128, 256>}, {pipeline_mode = #tpu.pipeline_mode<synchronous>, transform_indices = @transform_1, window_bounds = array<i64: 1, 256>}, {pipeline_mode = #tpu.pipeline_mode<synchronous>, transform_indices = @transform_2, window_bounds = array<i64: 1, 256>}, {transform_indices = @transform_3, window_bounds = array<i64: 128, 256>}]} {
    %c0 = arith.constant 0 : index
    %c0_0 = arith.constant 0 : index
    %0 = vector.load %arg1[%c0, %c0_0] : memref<128x256xf32, #tpu.memory_space<vmem>>, vector<128x256xf32>
    %c0_1 = arith.constant 0 : index
    %c0_2 = arith.constant 0 : index
    %1 = vector.load %arg2[%c0_1, %c0_2] : memref<1x256xf32, #tpu.memory_space<vmem>>, vector<1x256xf32>
    %2 = vector.broadcast %1 : vector<1x256xf32> to vector<128x256xf32>
    %3 = arith.mulf %0, %2 : vector<128x256xf32>
    %c0_3 = arith.constant 0 : index
    %c0_4 = arith.constant 0 : index
    %4 = vector.load %arg3[%c0_3, %c0_4] : memref<1x256xf32, #tpu.memory_space<vmem>>, vector<1x256xf32>
    %5 = vector.broadcast %4 : vector<1x256xf32> to vector<128x256xf32>
    %6 = arith.addf %3, %5 : vector<128x256xf32>
    %cst = arith.constant 0.000000e+00 : f32
    %7 = vector.broadcast %cst : f32 to vector<128x256xf32>
    %8 = arith.maximumf %6, %7 : vector<128x256xf32>
    %c0_5 = arith.constant 0 : index
    %c0_6 = arith.constant 0 : index
    %9 = vector.load %arg4[%c0_5, %c0_6] : memref<128x256xf32, #tpu.memory_space<vmem>>, vector<128x256xf32>
    tpu.vector_store %arg4[%c0_5, %c0_6], %8 {strides = array<i32>} : memref<128x256xf32, #tpu.memory_space<vmem>>, vector<128x256xf32>,
    return
  }
  func.func @transform_0(%arg0: i32) -> (i32, i32) {
    %c0_i32 = arith.constant 0 : i32
    %c0_i32_0 = arith.constant 0 : i32
    return %arg0, %c0_i32 : i32, i32
  }
  func.func @transform_1(%arg0: i32) -> (i32, i32) {
    %c0_i32 = arith.constant 0 : i32
    %c0_i32_0 = arith.constant 0 : i32
    %c0_i32_1 = arith.constant 0 : i32
    return %c0_i32, %c0_i32_0 : i32, i32
  }
  func.func @transform_2(%arg0: i32) -> (i32, i32) {
    %c0_i32 = arith.constant 0 : i32
    %c0_i32_0 = arith.constant 0 : i32
    %c0_i32_1 = arith.constant 0 : i32
    return %c0_i32, %c0_i32_0 : i32, i32
  }
  func.func @transform_3(%arg0: i32) -> (i32, i32) {
    %c0_i32 = arith.constant 0 : i32
    %c0_i32_0 = arith.constant 0 : i32
    return %arg0, %c0_i32 : i32, i32
  }
}

</mosaic_0001>

<llo_original>
// kernel: conv_block_forward.3
$region0: #{conv_block_forward.3}
  #allocation0 [shape = 'u32[]', space=smem, size = 0x4, offset = 0x4, fixed_abs, tag = 'smem constant byte address 0x4 - core index']
  #allocation1 [shape = 'u32[144,128]{1,0:T(1,128)}', space=vmem, size = 0x12000, scoped, tag = 'internal scratch']
  %s0 = inlined_call_operand.vmem [shape: f32[128,256], index: 0, kind: input, shape index: {}]
  %s1 = inlined_call_operand.vmem [shape: f32[1,256], index: 1, kind: input, shape index: {}]
  %s2 = inlined_call_operand.vmem [shape: f32[1,256], index: 2, kind: input, shape index: {}]
  %s3 = inlined_call_operand.hbm [shape: f32[128,256], index: 3, kind: output, shape index: {}]
  %s4 = sld [smem:[#allocation0]]
  $region22: #{conv_block_forward.3} parent=0
    _
  %s6 = ssub.s32 1, %s4
  %s7 = scalar_select 0, %s6, %s4
  $region1: #{conv_block_forward.3} parent=0
    #allocation2 [shape = 'u8[131072]{0}', space=vmem, size = 0x20000, scoped, tag = 'output window, operand 0, single buffered']
    #allocation3 [shape = 's32[1]{0}', space=sflag, size = 0x4, scoped, tag = 'scoped memory for conv_block_forward.3']
    %8 = vsyncpa [#allocation3], 0
    // Predicated region
    $region2: #{conv_block_forward.3} parent=1 // pred_check
      _
    $region3: #{conv_block_forward.3} parent=1 // pred_check_branch
      %10 = sbr.rel (0) target = $region5
    $region4: #{conv_block_forward.3} parent=1 // pred_region
      _
    $region5: #{conv_block_forward.3} parent=1 // pred_fallthru
      _
    // Predicated region
    $region6: #{conv_block_forward.3} parent=1 // pred_check
      _
    $region7: #{conv_block_forward.3} parent=1 // pred_check_branch
      %12 = sbr.rel (0) target = $region9
    $region8: #{conv_block_forward.3} parent=1 // pred_region
      _
    $region9: #{conv_block_forward.3} parent=1 // pred_fallthru
      _
    // Predicated region
    $region10: #{conv_block_forward.3} parent=1 // pred_check
      _
    $region11: #{conv_block_forward.3} parent=1 // pred_check_branch
      %14 = sbr.rel (0) target = $region13
    $region12: #{conv_block_forward.3} parent=1 // pred_region
      _
    $region13: #{conv_block_forward.3} parent=1 // pred_fallthru
      _
    %v15 = vld [vmem:[%s0] sm:$0xff]
    %v16 = vld [vmem:[%s0 + $0x8] sm:$0xff]
    %v17 = vld [vmem:[%s0 + $0x10] sm:$0xff]
    %v18 = vld [vmem:[%s0 + $0x18] sm:$0xff]
    %v19 = vld [vmem:[%s0 + $0x20] sm:$0xff]
    %v20 = vld [vmem:[%s0 + $0x28] sm:$0xff]
    %v21 = vld [vmem:[%s0 + $0x30] sm:$0xff]
    %v22 = vld [vmem:[%s0 + $0x38] sm:$0xff]
    %v23 = vld [vmem:[%s0 + $0x40] sm:$0xff]
    %v24 = vld [vmem:[%s0 + $0x48] sm:$0xff]
    %v25 = vld [vmem:[%s0 + $0x50] sm:$0xff]
    %v26 = vld [vmem:[%s0 + $0x58] sm:$0xff]
    %v27 = vld [vmem:[%s0 + $0x60] sm:$0xff]
    %v28 = vld [vmem:[%s0 + $0x68] sm:$0xff]
    %v29 = vld [vmem:[%s0 + $0x70] sm:$0xff]
    %v30 = vld [vmem:[%s0 + $0x78] sm:$0xff]
    %v31 = vld [vmem:[%s0 + $0x80] sm:$0xff]
    %v32 = vld [vmem:[%s0 + $0x88] sm:$0xff]
    %v33 = vld [vmem:[%s0 + $0x90] sm:$0xff]
    %v34 = vld [vmem:[%s0 + $0x98] sm:$0xff]
    %v35 = vld [vmem:[%s0 + $0xa0] sm:$0xff]
    %v36 = vld [vmem:[%s0 + $0xa8] sm:$0xff]
    %v37 = vld [vmem:[%s0 + $0xb0] sm:$0xff]
    %v38 = vld [vmem:[%s0 + $0xb8] sm:$0xff]
    %v39 = vld [vmem:[%s0 + $0xc0] sm:$0xff]
    %v40 = vld [vmem:[%s0 + $0xc8] sm:$0xff]
    %v41 = vld [vmem:[%s0 + $0xd0] sm:$0xff]
    %v42 = vld [vmem:[%s0 + $0xd8] sm:$0xff]
    %v43 = vld [vmem:[%s0 + $0xe0] sm:$0xff]
    %v44 = vld [vmem:[%s0 + $0xe8] sm:$0xff]
    %v45 = vld [vmem:[%s0 + $0xf0] sm:$0xff]
    %v46 = vld [vmem:[%s0 + $0xf8] sm:$0xff]
    %v47 = vld [vmem:[%s1] sm:$0x3]
    %v49 = vlaneseq
    %v50 = vshrl.u32 %v49, 7
    %v51 = vsub.s32 0, %v50
    %v52 = vrot.slane %v47, %v51
    %v53 = vlaneseq
    %v54 = vshrl.u32 %v53, 7
    %v55 = vsub.s32 1, %v54
    %v56 = vrot.slane %v47, %v55
    %v59 = vmul.f32 %v15, %v52
    %v60 = vmul.f32 %v16, %v56
    %v61 = vmul.f32 %v17, %v52
    %v62 = vmul.f32 %v18, %v56
    %v63 = vmul.f32 %v19, %v52
    %v64 = vmul.f32 %v20, %v56
    %v65 = vmul.f32 %v21, %v52
    %v66 = vmul.f32 %v22, %v56
    %v67 = vmul.f32 %v23, %v52
    %v68 = vmul.f32 %v24, %v56
    %v69 = vmul.f32 %v25, %v52
    %v70 = vmul.f32 %v26, %v56
    %v71 = vmul.f32 %v27, %v52
    %v72 = vmul.f32 %v28, %v56
    %v73 = vmul.f32 %v29, %v52
    %v74 = vmul.f32 %v30, %v56
    %v75 = vmul.f32 %v31, %v52
    %v76 = vmul.f32 %v32, %v56
    %v77 = vmul.f32 %v33, %v52
    %v78 = vmul.f32 %v34, %v56
    %v79 = vmul.f32 %v35, %v52
    %v80 = vmul.f32 %v36, %v56
    %v81 = vmul.f32 %v37, %v52
    %v82 = vmul.f32 %v38, %v56
    %v83 = vmul.f32 %v39, %v52
    %v84 = vmul.f32 %v40, %v56
    %v85 = vmul.f32 %v41, %v52
    %v86 = vmul.f32 %v42, %v56
    %v87 = vmul.f32 %v43, %v52
    %v88 = vmul.f32 %v44, %v56
    %v89 = vmul.f32 %v45, %v52
    %v90 = vmul.f32 %v46, %v56
    %v91 = vld [vmem:[%s2] sm:$0x3]
    %v93 = vlaneseq
    %v94 = vshrl.u32 %v93, 7
    %v95 = vsub.s32 0, %v94
    %v96 = vrot.slane %v91, %v95
    %v97 = vlaneseq
    %v98 = vshrl.u32 %v97, 7
    %v99 = vsub.s32 1, %v98
    %v100 = vrot.slane %v91, %v99
    %v103 = vadd.f32 %v59, %v96
    %v104 = vadd.f32 %v60, %v100
    %v105 = vadd.f32 %v61, %v96
    %v106 = vadd.f32 %v62, %v100
    %v107 = vadd.f32 %v63, %v96
    %v108 = vadd.f32 %v64, %v100
    %v109 = vadd.f32 %v65, %v96
    %v110 = vadd.f32 %v66, %v100
    %v111 = vadd.f32 %v67, %v96
    %v112 = vadd.f32 %v68, %v100
    %v113 = vadd.f32 %v69, %v96
    %v114 = vadd.f32 %v70, %v100
    %v115 = vadd.f32 %v71, %v96
    %v116 = vadd.f32 %v72, %v100
    %v117 = vadd.f32 %v73, %v96
    %v118 = vadd.f32 %v74, %v100
    %v119 = vadd.f32 %v75, %v96
    %v120 = vadd.f32 %v76, %v100
    %v121 = vadd.f32 %v77, %v96
    %v122 = vadd.f32 %v78, %v100
    %v123 = vadd.f32 %v79, %v96
    %v124 = vadd.f32 %v80, %v100
    %v125 = vadd.f32 %v81, %v96
    %v126 = vadd.f32 %v82, %v100
    %v127 = vadd.f32 %v83, %v96
    %v128 = vadd.f32 %v84, %v100
    %v129 = vadd.f32 %v85, %v96
    %v130 = vadd.f32 %v86, %v100
    %v131 = vadd.f32 %v87, %v96
    %v132 = vadd.f32 %v88, %v100
    %v133 = vadd.f32 %v89, %v96
    %v134 = vadd.f32 %v90, %v100
    %v135 = vmax.f32 %v103, 0.0
    %v136 = vmax.f32 %v104, 0.0
    %v137 = vmax.f32 %v105, 0.0
    %v138 = vmax.f32 %v106, 0.0
    %v139 = vmax.f32 %v107, 0.0
    %v140 = vmax.f32 %v108, 0.0
    %v141 = vmax.f32 %v109, 0.0
    %v142 = vmax.f32 %v110, 0.0
    %v143 = vmax.f32 %v111, 0.0
    %v144 = vmax.f32 %v112, 0.0
    %v145 = vmax.f32 %v113, 0.0
    %v146 = vmax.f32 %v114, 0.0
    %v147 = vmax.f32 %v115, 0.0
    %v148 = vmax.f32 %v116, 0.0
    %v149 = vmax.f32 %v117, 0.0
    %v150 = vmax.f32 %v118, 0.0
    %v151 = vmax.f32 %v119, 0.0
    %v152 = vmax.f32 %v120, 0.0
    %v153 = vmax.f32 %v121, 0.0
    %v154 = vmax.f32 %v122, 0.0
    %v155 = vmax.f32 %v123, 0.0
    %v156 = vmax.f32 %v124, 0.0
    %v157 = vmax.f32 %v125, 0.0
    %v158 = vmax.f32 %v126, 0.0
    %v159 = vmax.f32 %v127, 0.0
    %v160 = vmax.f32 %v128, 0.0
    %v161 = vmax.f32 %v129, 0.0
    %v162 = vmax.f32 %v130, 0.0
    %v163 = vmax.f32 %v131, 0.0
    %v164 = vmax.f32 %v132, 0.0
    %v165 = vmax.f32 %v133, 0.0
    %v166 = vmax.f32 %v134, 0.0
    %167 = vst [vmem:[#allocation2] sm:$0xff] %v135
    %168 = vst [vmem:[#allocation2 + $0x8] sm:$0xff] %v136
    %169 = vst [vmem:[#allocation2 + $0x10] sm:$0xff] %v137
    %170 = vst [vmem:[#allocation2 + $0x18] sm:$0xff] %v138
    %171 = vst [vmem:[#allocation2 + $0x20] sm:$0xff] %v139
    %172 = vst [vmem:[#allocation2 + $0x28] sm:$0xff] %v140
    %173 = vst [vmem:[#allocation2 + $0x30] sm:$0xff] %v141
    %174 = vst [vmem:[#allocation2 + $0x38] sm:$0xff] %v142
    %175 = vst [vmem:[#allocation2 + $0x40] sm:$0xff] %v143
    %176 = vst [vmem:[#allocation2 + $0x48] sm:$0xff] %v144
    %177 = vst [vmem:[#allocation2 + $0x50] sm:$0xff] %v145
    %178 = vst [vmem:[#allocation2 + $0x58] sm:$0xff] %v146
    %179 = vst [vmem:[#allocation2 + $0x60] sm:$0xff] %v147
    %180 = vst [vmem:[#allocation2 + $0x68] sm:$0xff] %v148
    %181 = vst [vmem:[#allocation2 + $0x70] sm:$0xff] %v149
    %182 = vst [vmem:[#allocation2 + $0x78] sm:$0xff] %v150
    %183 = vst [vmem:[#allocation2 + $0x80] sm:$0xff] %v151
    %184 = vst [vmem:[#allocation2 + $0x88] sm:$0xff] %v152
    %185 = vst [vmem:[#allocation2 + $0x90] sm:$0xff] %v153
    %186 = vst [vmem:[#allocation2 + $0x98] sm:$0xff] %v154
    %187 = vst [vmem:[#allocation2 + $0xa0] sm:$0xff] %v155
    %188 = vst [vmem:[#allocation2 + $0xa8] sm:$0xff] %v156
    %189 = vst [vmem:[#allocation2 + $0xb0] sm:$0xff] %v157
    %190 = vst [vmem:[#allocation2 + $0xb8] sm:$0xff] %v158
    %191 = vst [vmem:[#allocation2 + $0xc0] sm:$0xff] %v159
    %192 = vst [vmem:[#allocation2 + $0xc8] sm:$0xff] %v160
    %193 = vst [vmem:[#allocation2 + $0xd0] sm:$0xff] %v161
    %194 = vst [vmem:[#allocation2 + $0xd8] sm:$0xff] %v162
    %195 = vst [vmem:[#allocation2 + $0xe0] sm:$0xff] %v163
    %196 = vst [vmem:[#allocation2 + $0xe8] sm:$0xff] %v164
    %197 = vst [vmem:[#allocation2 + $0xf0] sm:$0xff] %v165
    %198 = vst [vmem:[#allocation2 + $0xf8] sm:$0xff] %v166
    // Predicated region
    $region14: #{conv_block_forward.3} parent=1 // pred_check
      _
    $region15: #{conv_block_forward.3} parent=1 // pred_check_branch
      %200 = sbr.rel (0) target = $region17
    $region16: #{conv_block_forward.3} parent=1 // pred_region
      %s202 = ssub.s32 4096, 4096
      %203 = vsyncadd [#allocation3], %s202
      %s204 = sshll.u32 [#allocation2], 4
      %s205 = int_to_ptr.vmem [resolvable:$true] %s204
      %210 = dma.vmem_to_hbm [thread:$0]  %s205, 4096, %s3, [#allocation3], 256, 256, 16
    $region17: #{conv_block_forward.3} parent=1 // pred_fallthru
      _
    // Predicated region
    $region18: #{conv_block_forward.3} parent=1 // pred_check
      _
    $region19: #{conv_block_forward.3} parent=1 // pred_check_branch
      %212 = sbr.rel (0) target = $region21
    $region20: #{conv_block_forward.3} parent=1 // pred_region
      %213 = dma.done [#allocation3], 4096
    $region21: #{conv_block_forward.3} parent=1 // pred_fallthru
      _
    %214 = vsyncpa [#allocation3], 1

// kernel: conv_block_forward.2
$region0: #{conv_block_forward.2}
  #allocation0 [shape = 'u32[]', space=smem, size = 0x4, offset = 0x4, fixed_abs, tag = 'smem constant byte address 0x4 - core index']
  #allocation1 [shape = 'u32[144,128]{1,0:T(1,128)}', space=vmem, size = 0x12000, scoped, tag = 'internal scratch']
  %s0 = inlined_call_operand.vmem [shape: bf16[128,512], index: 0, kind: input, shape index: {}]
  %s1 = inlined_call_operand.vmem [shape: bf16[512,256], index: 1, kind: input, shape index: {}]
  %s2 = inlined_call_operand.vmem [shape: f32[128,256], index: 2, kind: output, shape index: {0}]
  %s3 = inlined_call_operand.vmem [shape: f32[8,256], index: 3, kind: output, shape index: {1}]
  %4 = xla_tuple %s2, %s3
  %s5 = sld [smem:[#allocation0]]
  $region26: #{conv_block_forward.2} parent=0
    _
  %s7 = ssub.s32 1, %s5
  %s8 = scalar_select 0, %s7, %s5
  // Predicated region
  $region2: #{conv_block_forward.2} parent=0 // pred_check
    _
  $region3: #{conv_block_forward.2} parent=0 // pred_check_branch
    %10 = sbr.rel (0) target = $region5
  $region4: #{conv_block_forward.2} parent=0 // pred_region
    _
  $region5: #{conv_block_forward.2} parent=0 // pred_fallthru
    _
  // Predicated region
  $region6: #{conv_block_forward.2} parent=0 // pred_check
    _
  $region7: #{conv_block_forward.2} parent=0 // pred_check_branch
    %12 = sbr.rel (0) target = $region9
  $region8: #{conv_block_forward.2} parent=0 // pred_region
    _
  $region9: #{conv_block_forward.2} parent=0 // pred_fallthru
    _
  %v13 = vld [vmem:[%s0] sm:$0xff]
  %v14 = vld [vmem:[%s0 + $0x8] sm:$0xff]
  %v15 = vld [vmem:[%s0 + $0x10] sm:$0xff]
  %v16 = vld [vmem:[%s0 + $0x18] sm:$0xff]
  %v17 = vld [vmem:[%s0 + $0x20] sm:$0xff]
  %v18 = vld [vmem:[%s0 + $0x28] sm:$0xff]
  %v19 = vld [vmem:[%s0 + $0x30] sm:$0xff]
  %v20 = vld [vmem:[%s0 + $0x38] sm:$0xff]
  %v21 = vld [vmem:[%s0 + $0x40] sm:$0xff]
  %v22 = vld [vmem:[%s0 + $0x48] sm:$0xff]
  %v23 = vld [vmem:[%s0 + $0x50] sm:$0xff]
  %v24 = vld [vmem:[%s0 + $0x58] sm:$0xff]
  %v25 = vld [vmem:[%s0 + $0x60] sm:$0xff]
  %v26 = vld [vmem:[%s0 + $0x68] sm:$0xff]
  %v27 = vld [vmem:[%s0 + $0x70] sm:$0xff]
  %v28 = vld [vmem:[%s0 + $0x78] sm:$0xff]
  %v29 = vld [vmem:[%s0 + $0x80] sm:$0xff]
  %v30 = vld [vmem:[%s0 + $0x88] sm:$0xff]
  %v31 = vld [vmem:[%s0 + $0x90] sm:$0xff]
  %v32 = vld [vmem:[%s0 + $0x98] sm:$0xff]
  %v33 = vld [vmem:[%s0 + $0xa0] sm:$0xff]
  %v34 = vld [vmem:[%s0 + $0xa8] sm:$0xff]
  %v35 = vld [vmem:[%s0 + $0xb0] sm:$0xff]
  %v36 = vld [vmem:[%s0 + $0xb8] sm:$0xff]
  %v37 = vld [vmem:[%s0 + $0xc0] sm:$0xff]
  %v38 = vld [vmem:[%s0 + $0xc8] sm:$0xff]
  %v39 = vld [vmem:[%s0 + $0xd0] sm:$0xff]
  %v40 = vld [vmem:[%s0 + $0xd8] sm:$0xff]
  %v41 = vld [vmem:[%s0 + $0xe0] sm:$0xff]
  %v42 = vld [vmem:[%s0 + $0xe8] sm:$0xff]
  %v43 = vld [vmem:[%s0 + $0xf0] sm:$0xff]
  %v44 = vld [vmem:[%s0 + $0xf8] sm:$0xff]
  %v45 = vld [vmem:[%s1] sm:$0xff]
  %v46 = vld [vmem:[%s1 + $0x8] sm:$0xff]
  %v47 = vld [vmem:[%s1 + $0x10] sm:$0xff]
  %v48 = vld [vmem:[%s1 + $0x18] sm:$0xff]
  %v49 = vld [vmem:[%s1 + $0x20] sm:$0xff]
  %v50 = vld [vmem:[%s1 + $0x28] sm:$0xff]
  %v51 = vld [vmem:[%s1 + $0x30] sm:$0xff]
  %v52 = vld [vmem:[%s1 + $0x38] sm:$0xff]
  %v53 = vld [vmem:[%s1 + $0x40] sm:$0xff]
  %v54 = vld [vmem:[%s1 + $0x48] sm:$0xff]
  %v55 = vld [vmem:[%s1 + $0x50] sm:$0xff]
  %v56 = vld [vmem:[%s1 + $0x58] sm:$0xff]
  %v57 = vld [vmem:[%s1 + $0x60] sm:$0xff]
  %v58 = vld [vmem:[%s1 + $0x68] sm:$0xff]
  %v59 = vld [vmem:[%s1 + $0x70] sm:$0xff]
  %v60 = vld [vmem:[%s1 + $0x78] sm:$0xff]
  %v61 = vld [vmem:[%s1 + $0x80] sm:$0xff]
  %v62 = vld [vmem:[%s1 + $0x88] sm:$0xff]
  %v63 = vld [vmem:[%s1 + $0x90] sm:$0xff]
  %v64 = vld [vmem:[%s1 + $0x98] sm:$0xff]
  %v65 = vld [vmem:[%s1 + $0xa0] sm:$0xff]
  %v66 = vld [vmem:[%s1 + $0xa8] sm:$0xff]
  %v67 = vld [vmem:[%s1 + $0xb0] sm:$0xff]
  %v68 = vld [vmem:[%s1 + $0xb8] sm:$0xff]
  %v69 = vld [vmem:[%s1 + $0xc0] sm:$0xff]
  %v70 = vld [vmem:[%s1 + $0xc8] sm:$0xff]
  %v71 = vld [vmem:[%s1 + $0xd0] sm:$0xff]
  %v72 = vld [vmem:[%s1 + $0xd8] sm:$0xff]
  %v73 = vld [vmem:[%s1 + $0xe0] sm:$0xff]
  %v74 = vld [vmem:[%s1 + $0xe8] sm:$0xff]
  %v75 = vld [vmem:[%s1 + $0xf0] sm:$0xff]
  %v76 = vld [vmem:[%s1 + $0xf8] sm:$0xff]
  %v77 = vld [vmem:[%s1 + $0x100] sm:$0xff]
  %v78 = vld [vmem:[%s1 + $0x108] sm:$0xff]
  %v79 = vld [vmem:[%s1 + $0x110] sm:$0xff]
  %v80 = vld [vmem:[%s1 + $0x118] sm:$0xff]
  %v81 = vld [vmem:[%s1 + $0x120] sm:$0xff]
  %v82 = vld [vmem:[%s1 + $0x128] sm:$0xff]
  %v83 = vld [vmem:[%s1 + $0x130] sm:$0xff]
  %v84 = vld [vmem:[%s1 + $0x138] sm:$0xff]
  %v85 = vld [vmem:[%s1 + $0x140] sm:$0xff]
  %v86 = vld [vmem:[%s1 + $0x148] sm:$0xff]
  %v87 = vld [vmem:[%s1 + $0x150] sm:$0xff]
  %v88 = vld [vmem:[%s1 + $0x158] sm:$0xff]
  %v89 = vld [vmem:[%s1 + $0x160] sm:$0xff]
  %v90 = vld [vmem:[%s1 + $0x168] sm:$0xff]
  %v91 = vld [vmem:[%s1 + $0x170] sm:$0xff]
  %v92 = vld [vmem:[%s1 + $0x178] sm:$0xff]
  %v93 = vld [vmem:[%s1 + $0x180] sm:$0xff]
  %v94 = vld [vmem:[%s1 + $0x188] sm:$0xff]
  %v95 = vld [vmem:[%s1 + $0x190] sm:$0xff]
  %v96 = vld [vmem:[%s1 + $0x198] sm:$0xff]
  %v97 = vld [vmem:[%s1 + $0x1a0] sm:$0xff]
  %v98 = vld [vmem:[%s1 + $0x1a8] sm:$0xff]
  %v99 = vld [vmem:[%s1 + $0x1b0] sm:$0xff]
  %v100 = vld [vmem:[%s1 + $0x1b8] sm:$0xff]
  %v101 = vld [vmem:[%s1 + $0x1c0] sm:$0xff]
  %v102 = vld [vmem:[%s1 + $0x1c8] sm:$0xff]
  %v103 = vld [vmem:[%s1 + $0x1d0] sm:$0xff]
  %v104 = vld [vmem:[%s1 + $0x1d8] sm:$0xff]
  %v105 = vld [vmem:[%s1 + $0x1e0] sm:$0xff]
  %v106 = vld [vmem:[%s1 + $0x1e8] sm:$0xff]
  %v107 = vld [vmem:[%s1 + $0x1f0] sm:$0xff]
  %v108 = vld [vmem:[%s1 + $0x1f8] sm:$0xff]
  %v141 = vunpack.c.l.b16 %v13
  %v142 = vunpack.c.h.b16 %v13
  %v143 = vunpack.c.l.b16 %v14
  %v144 = vunpack.c.h.b16 %v14
  %v145 = vunpack.c.l.b16 %v15
  %v146 = vunpack.c.h.b16 %v15
  %v147 = vunpack.c.l.b16 %v16
  %v148 = vunpack.c.h.b16 %v16
  %v149 = vunpack.c.l.b16 %v17
  %v150 = vunpack.c.h.b16 %v17
  %v151 = vunpack.c.l.b16 %v18
  %v152 = vunpack.c.h.b16 %v18
  %v153 = vunpack.c.l.b16 %v19
  %v154 = vunpack.c.h.b16 %v19
  %v155 = vunpack.c.l.b16 %v20
  %v156 = vunpack.c.h.b16 %v20
  %v157 = vunpack.c.l.b16 %v21
  %v158 = vunpack.c.h.b16 %v21
  %v159 = vunpack.c.l.b16 %v22
  %v160 = vunpack.c.h.b16 %v22
  %v161 = vunpack.c.l.b16 %v23
  %v162 = vunpack.c.h.b16 %v23
  %v163 = vunpack.c.l.b16 %v24
  %v164 = vunpack.c.h.b16 %v24
  %v165 = vunpack.c.l.b16 %v25
  %v166 = vunpack.c.h.b16 %v25
  %v167 = vunpack.c.l.b16 %v26
  %v168 = vunpack.c.h.b16 %v26
  %v169 = vunpack.c.l.b16 %v27
  %v170 = vunpack.c.h.b16 %v27
  %v171 = vunpack.c.l.b16 %v28
  %v172 = vunpack.c.h.b16 %v28
  %v173 = vunpack.c.l.b16 %v29
  %v174 = vunpack.c.h.b16 %v29
  %v175 = vunpack.c.l.b16 %v30
  %v176 = vunpack.c.h.b16 %v30
  %v177 = vunpack.c.l.b16 %v31
  %v178 = vunpack.c.h.b16 %v31
  %v179 = vunpack.c.l.b16 %v32
  %v180 = vunpack.c.h.b16 %v32
  %v181 = vunpack.c.l.b16 %v33
  %v182 = vunpack.c.h.b16 %v33
  %v183 = vunpack.c.l.b16 %v34
  %v184 = vunpack.c.h.b16 %v34
  %v185 = vunpack.c.l.b16 %v35
  %v186 = vunpack.c.h.b16 %v35
  %v187 = vunpack.c.l.b16 %v36
  %v188 = vunpack.c.h.b16 %v36
  %v189 = vunpack.c.l.b16 %v37
  %v190 = vunpack.c.h.b16 %v37
  %v191 = vunpack.c.l.b16 %v38
  %v192 = vunpack.c.h.b16 %v38
  %v193 = vunpack.c.l.b16 %v39
  %v194 = vunpack.c.h.b16 %v39
  %v195 = vunpack.c.l.b16 %v40
  %v196 = vunpack.c.h.b16 %v40
  %v197 = vunpack.c.l.b16 %v41
  %v198 = vunpack.c.h.b16 %v41
  %v199 = vunpack.c.l.b16 %v42
  %v200 = vunpack.c.h.b16 %v42
  %v201 = vunpack.c.l.b16 %v43
  %v202 = vunpack.c.h.b16 %v43
  %v203 = vunpack.c.l.b16 %v44
  %v204 = vunpack.c.h.b16 %v44
  %v205 = vpack.c.b16 %v145, %v141
  %v206 = vpack.c.b16 %v146, %v142
  %v207 = vpack.c.b16 %v147, %v143
  %v208 = vpack.c.b16 %v148, %v144
  %v209 = vpack.c.b16 %v153, %v149
  %v210 = vpack.c.b16 %v154, %v150
  %v211 = vpack.c.b16 %v155, %v151
  %v212 = vpack.c.b16 %v156, %v152
  %v213 = vpack.c.b16 %v161, %v157
  %v214 = vpack.c.b16 %v162, %v158
  %v215 = vpack.c.b16 %v163, %v159
  %v216 = vpack.c.b16 %v164, %v160
  %v217 = vpack.c.b16 %v169, %v165
  %v218 = vpack.c.b16 %v170, %v166
  %v219 = vpack.c.b16 %v171, %v167
  %v220 = vpack.c.b16 %v172, %v168
  %v221 = vpack.c.b16 %v177, %v173
  %v222 = vpack.c.b16 %v178, %v174
  %v223 = vpack.c.b16 %v179, %v175
  %v224 = vpack.c.b16 %v180, %v176
  %v225 = vpack.c.b16 %v185, %v181
  %v226 = vpack.c.b16 %v186, %v182
  %v227 = vpack.c.b16 %v187, %v183
  %v228 = vpack.c.b16 %v188, %v184
  %v229 = vpack.c.b16 %v193, %v189
  %v230 = vpack.c.b16 %v194, %v190
  %v231 = vpack.c.b16 %v195, %v191
  %v232 = vpack.c.b16 %v196, %v192
  %v233 = vpack.c.b16 %v201, %v197
  %v234 = vpack.c.b16 %v202, %v198
  %v235 = vpack.c.b16 %v203, %v199
  %v236 = vpack.c.b16 %v204, %v200
  %v333 = vunpack.c.l.b16 %v45
  %v334 = vunpack.c.h.b16 %v45
  %v335 = vunpack.c.l.b16 %v46
  %v336 = vunpack.c.h.b16 %v46
  %v337 = vunpack.c.l.b16 %v47
  %v338 = vunpack.c.h.b16 %v47
  %v339 = vunpack.c.l.b16 %v48
  %v340 = vunpack.c.h.b16 %v48
  %v341 = vunpack.c.l.b16 %v49
  %v342 = vunpack.c.h.b16 %v49
  %v343 = vunpack.c.l.b16 %v50
  %v344 = vunpack.c.h.b16 %v50
  %v345 = vunpack.c.l.b16 %v51
  %v346 = vunpack.c.h.b16 %v51
  %v347 = vunpack.c.l.b16 %v52
  %v348 = vunpack.c.h.b16 %v52
  %v349 = vunpack.c.l.b16 %v53
  %v350 = vunpack.c.h.b16 %v53
  %v351 = vunpack.c.l.b16 %v54
  %v352 = vunpack.c.h.b16 %v54
  %v353 = vunpack.c.l.b16 %v55
  %v354 = vunpack.c.h.b16 %v55
  %v355 = vunpack.c.l.b16 %v56
  %v356 = vunpack.c.h.b16 %v56
  %v357 = vunpack.c.l.b16 %v57
  %v358 = vunpack.c.h.b16 %v57
  %v359 = vunpack.c.l.b16 %v58
  %v360 = vunpack.c.h.b16 %v58
  %v361 = vunpack.c.l.b16 %v59
  %v362 = vunpack.c.h.b16 %v59
  %v363 = vunpack.c.l.b16 %v60
  %v364 = vunpack.c.h.b16 %v60
  %v365 = vunpack.c.l.b16 %v61
  %v366 = vunpack.c.h.b16 %v61
  %v367 = vunpack.c.l.b16 %v62
  %v368 = vunpack.c.h.b16 %v62
  %v369 = vunpack.c.l.b16 %v63
  %v370 = vunpack.c.h.b16 %v63
  %v371 = vunpack.c.l.b16 %v64
  %v372 = vunpack.c.h.b16 %v64
  %v373 = vunpack.c.l.b16 %v65
  %v374 = vunpack.c.h.b16 %v65
  %v375 = vunpack.c.l.b16 %v66
  %v376 = vunpack.c.h.b16 %v66
  %v377 = vunpack.c.l.b16 %v67
  %v378 = vunpack.c.h.b16 %v67
  %v379 = vunpack.c.l.b16 %v68
  %v380 = vunpack.c.h.b16 %v68
  %v381 = vunpack.c.l.b16 %v69
  %v382 = vunpack.c.h.b16 %v69
  %v383 = vunpack.c.l.b16 %v70
  %v384 = vunpack.c.h.b16 %v70
  %v385 = vunpack.c.l.b16 %v71
  %v386 = vunpack.c.h.b16 %v71
  %v387 = vunpack.c.l.b16 %v72
  %v388 = vunpack.c.h.b16 %v72
  %v389 = vunpack.c.l.b16 %v73
  %v390 = vunpack.c.h.b16 %v73
  %v391 = vunpack.c.l.b16 %v74
  %v392 = vunpack.c.h.b16 %v74
  %v393 = vunpack.c.l.b16 %v75
  %v394 = vunpack.c.h.b16 %v75
  %v395 = vunpack.c.l.b16 %v76
  %v396 = vunpack.c.h.b16 %v76
  %v397 = vunpack.c.l.b16 %v77
  %v398 = vunpack.c.h.b16 %v77
  %v399 = vunpack.c.l.b16 %v78
  %v400 = vunpack.c.h.b16 %v78
  %v401 = vunpack.c.l.b16 %v79
  %v402 = vunpack.c.h.b16 %v79
  %v403 = vunpack.c.l.b16 %v80
  %v404 = vunpack.c.h.b16 %v80
  %v405 = vunpack.c.l.b16 %v81
  %v406 = vunpack.c.h.b16 %v81
  %v407 = vunpack.c.l.b16 %v82
  %v408 = vunpack.c.h.b16 %v82
  %v409 = vunpack.c.l.b16 %v83
  %v410 = vunpack.c.h.b16 %v83
  %v411 = vunpack.c.l.b16 %v84
  %v412 = vunpack.c.h.b16 %v84
  %v413 = vunpack.c.l.b16 %v85
  %v414 = vunpack.c.h.b16 %v85
  %v415 = vunpack.c.l.b16 %v86
  %v416 = vunpack.c.h.b16 %v86
  %v417 = vunpack.c.l.b16 %v87
  %v418 = vunpack.c.h.b16 %v87
  %v419 = vunpack.c.l.b16 %v88
  %v420 = vunpack.c.h.b16 %v88
  %v421 = vunpack.c.l.b16 %v89
  %v422 = vunpack.c.h.b16 %v89
  %v423 = vunpack.c.l.b16 %v90
  %v424 = vunpack.c.h.b16 %v90
  %v425 = vunpack.c.l.b16 %v91
  %v426 = vunpack.c.h.b16 %v91
  %v427 = vunpack.c.l.b16 %v92
  %v428 = vunpack.c.h.b16 %v92
  %v429 = vunpack.c.l.b16 %v93
  %v430 = vunpack.c.h.b16 %v93
  %v431 = vunpack.c.l.b16 %v94
  %v432 = vunpack.c.h.b16 %v94
  %v433 = vunpack.c.l.b16 %v95
  %v434 = vunpack.c.h.b16 %v95
  %v435 = vunpack.c.l.b16 %v96
  %v436 = vunpack.c.h.b16 %v96
  %v437 = vunpack.c.l.b16 %v97
  %v438 = vunpack.c.h.b16 %v97
  %v439 = vunpack.c.l.b16 %v98
  %v440 = vunpack.c.h.b16 %v98
  %v441 = vunpack.c.l.b16 %v99
  %v442 = vunpack.c.h.b16 %v99
  %v443 = vunpack.c.l.b16 %v100
  %v444 = vunpack.c.h.b16 %v100
  %v445 = vunpack.c.l.b16 %v101
  %v446 = vunpack.c.h.b16 %v101
  %v447 = vunpack.c.l.b16 %v102
  %v448 = vunpack.c.h.b16 %v102
  %v449 = vunpack.c.l.b16 %v103
  %v450 = vunpack.c.h.b16 %v103
  %v451 = vunpack.c.l.b16 %v104
  %v452 = vunpack.c.h.b16 %v104
  %v453 = vunpack.c.l.b16 %v105
  %v454 = vunpack.c.h.b16 %v105
  %v455 = vunpack.c.l.b16 %v106
  %v456 = vunpack.c.h.b16 %v106
  %v457 = vunpack.c.l.b16 %v107
  %v458 = vunpack.c.h.b16 %v107
  %v459 = vunpack.c.l.b16 %v108
  %v460 = vunpack.c.h.b16 %v108
  %v461 = vpack.c.b16 %v335, %v333
  %v462 = vpack.c.b16 %v336, %v334
  %v463 = vpack.c.b16 %v339, %v337
  %v464 = vpack.c.b16 %v340, %v338
  %v465 = vpack.c.b16 %v343, %v341
  %v466 = vpack.c.b16 %v344, %v342
  %v467 = vpack.c.b16 %v347, %v345
  %v468 = vpack.c.b16 %v348, %v346
  %v469 = vpack.c.b16 %v351, %v349
  %v470 = vpack.c.b16 %v352, %v350
  %v471 = vpack.c.b16 %v355, %v353
  %v472 = vpack.c.b16 %v356, %v354
  %v473 = vpack.c.b16 %v359, %v357
  %v474 = vpack.c.b16 %v360, %v358
  %v475 = vpack.c.b16 %v363, %v361
  %v476 = vpack.c.b16 %v364, %v362
  %v477 = vpack.c.b16 %v367, %v365
  %v478 = vpack.c.b16 %v368, %v366
  %v479 = vpack.c.b16 %v371, %v369
  %v480 = vpack.c.b16 %v372, %v370
  %v481 = vpack.c.b16 %v375, %v373
  %v482 = vpack.c.b16 %v376, %v374
  %v483 = vpack.c.b16 %v379, %v377
  %v484 = vpack.c.b16 %v380, %v378
  %v485 = vpack.c.b16 %v383, %v381
  %v486 = vpack.c.b16 %v384, %v382
  %v487 = vpack.c.b16 %v387, %v385
  %v488 = vpack.c.b16 %v388, %v386
  %v489 = vpack.c.b16 %v391, %v389
  %v490 = vpack.c.b16 %v392, %v390
  %v491 = vpack.c.b16 %v395, %v393
  %v492 = vpack.c.b16 %v396, %v394
  %v493 = vpack.c.b16 %v399, %v397
  %v494 = vpack.c.b16 %v400, %v398
  %v495 = vpack.c.b16 %v403, %v401
  %v496 = vpack.c.b16 %v404, %v402
  %v497 = vpack.c.b16 %v407, %v405
  %v498 = vpack.c.b16 %v408, %v406
  %v499 = vpack.c.b16 %v411, %v409
  %v500 = vpack.c.b16 %v412, %v410
  %v501 = vpack.c.b16 %v415, %v413
  %v502 = vpack.c.b16 %v416, %v414
  %v503 = vpack.c.b16 %v419, %v417
  %v504 = vpack.c.b16 %v420, %v418
  %v505 = vpack.c.b16 %v423, %v421
  %v506 = vpack.c.b16 %v424, %v422
  %v507 = vpack.c.b16 %v427, %v425
  %v508 = vpack.c.b16 %v428, %v426
  %v509 = vpack.c.b16 %v431, %v429
  %v510 = vpack.c.b16 %v432, %v430
  %v511 = vpack.c.b16 %v435, %v433
  %v512 = vpack.c.b16 %v436, %v434
  %v513 = vpack.c.b16 %v439, %v437
  %v514 = vpack.c.b16 %v440, %v438
  %v515 = vpack.c.b16 %v443, %v441
  %v516 = vpack.c.b16 %v444, %v442
  %v517 = vpack.c.b16 %v447, %v445
  %v518 = vpack.c.b16 %v448, %v446
  %v519 = vpack.c.b16 %v451, %v449
  %v520 = vpack.c.b16 %v452, %v450
  %v521 = vpack.c.b16 %v455, %v453
  %v522 = vpack.c.b16 %v456, %v454
  %v523 = vpack.c.b16 %v459, %v457
  %v524 = vpack.c.b16 %v460, %v458
  %589 = vmatprep.subr.bf16.mxu0 %v462
  %590 = vmatpush1.bf16.msra.mxu0 %v461
  %591 = vmatprep.subr.bf16.mxu0 %v464
  %592 = vmatpush1.bf16.msra.mxu0 %v463
  %593 = vmatprep.subr.bf16.mxu0 %v466
  %594 = vmatpush1.bf16.msra.mxu0 %v465
  %595 = vmatprep.subr.bf16.mxu0 %v468
  %596 = vmatpush1.bf16.msra.mxu0 %v467
  %597 = vmatprep.subr.bf16.mxu0 %v470
  %598 = vmatpush1.bf16.msra.mxu0 %v469
  %599 = vmatprep.subr.bf16.mxu0 %v472
  %600 = vmatpush1.bf16.msra.mxu0 %v471
  %601 = vmatprep.subr.bf16.mxu0 %v474
  %602 = vmatpush1.bf16.msra.mxu0 %v473
  %603 = vmatprep.subr.bf16.mxu0 %v476
  %604 = vmatpush1.bf16.msra.mxu0 %v475
  %605 = vmatprep.subr.bf16.mxu0 %v478
  %606 = vmatpush1.bf16.msra.mxu0 %v477
  %607 = vmatprep.subr.bf16.mxu0 %v480
  %608 = vmatpush1.bf16.msra.mxu0 %v479
  %609 = vmatprep.subr.bf16.mxu0 %v482
  %610 = vmatpush1.bf16.msra.mxu0 %v481
  %611 = vmatprep.subr.bf16.mxu0 %v484
  %612 = vmatpush1.bf16.msra.mxu0 %v483
  %613 = vmatprep.subr.bf16.mxu0 %v486
  %614 = vmatpush1.bf16.msra.mxu0 %v485
  %615 = vmatprep.subr.bf16.mxu0 %v488
  %616 = vmatpush1.bf16.msra.mxu0 %v487
  %617 = vmatprep.subr.bf16.mxu0 %v490
  %618 = vmatpush1.bf16.msra.mxu0 %v489
  %619 = vmatprep.subr.bf16.mxu0 %v492
  %620 = vmatpush1.bf16.msra.mxu0 %v491
  %621 = vmatprep.mubr.bf16.mxu0 %v206
  %622 = vmatmul.mubr.bf16.gmra.mrb[0].mxu0 %v205
  %v623 = vpop.f32.mrb[0].mxu0
  %v624 = vadd.f32 0.0, %v623
  %v625 = vpop.f32.mrb[0].mxu0
  %v626 = vadd.f32 0.0, %v625
  %v627 = vpop.f32.mrb[0].mxu0
  %v628 = vadd.f32 0.0, %v627
  %v629 = vpop.f32.mrb[0].mxu0
  %v630 = vadd.f32 0.0, %v629
  %631 = vmatprep.mubr.bf16.mxu0 %v210
  %632 = vmatmul.mubr.bf16.gmra.mrb[0].mxu0 %v209
  %v633 = vpop.f32.mrb[0].mxu0
  %v634 = vadd.f32 0.0, %v633
  %v635 = vpop.f32.mrb[0].mxu0
  %v636 = vadd.f32 0.0, %v635
  %v637 = vpop.f32.mrb[0].mxu0
  %v638 = vadd.f32 0.0, %v637
  %v639 = vpop.f32.mrb[0].mxu0
  %v640 = vadd.f32 0.0, %v639
  %641 = vmatprep.mubr.bf16.mxu0 %v214
  %642 = vmatmul.mubr.bf16.gmra.mrb[0].mxu0 %v213
  %v643 = vpop.f32.mrb[0].mxu0
  %v644 = vadd.f32 0.0, %v643
  %v645 = vpop.f32.mrb[0].mxu0
  %v646 = vadd.f32 0.0, %v645
  %v647 = vpop.f32.mrb[0].mxu0
  %v648 = vadd.f32 0.0, %v647
  %v649 = vpop.f32.mrb[0].mxu0
  %v650 = vadd.f32 0.0, %v649
  %651 = vmatprep.mubr.bf16.mxu0 %v218
  %652 = vmatmul.mubr.bf16.gmra.mrb[0].mxu0 %v217
  %v653 = vpop.f32.mrb[0].mxu0
  %v654 = vadd.f32 0.0, %v653
  %v655 = vpop.f32.mrb[0].mxu0
  %v656 = vadd.f32 0.0, %v655
  %v657 = vpop.f32.mrb[0].mxu0
  %v658 = vadd.f32 0.0, %v657
  %v659 = vpop.f32.mrb[0].mxu0
  %v660 = vadd.f32 0.0, %v659
  %661 = vmatprep.mubr.bf16.mxu0 %v222
  %662 = vmatmul.mubr.bf16.gmra.mrb[0].mxu0 %v221
  %v663 = vpop.f32.mrb[0].mxu0
  %v664 = vadd.f32 0.0, %v663
  %v665 = vpop.f32.mrb[0].mxu0
  %v666 = vadd.f32 0.0, %v665
  %v667 = vpop.f32.mrb[0].mxu0
  %v668 = vadd.f32 0.0, %v667
  %v669 = vpop.f32.mrb[0].mxu0
  %v670 = vadd.f32 0.0, %v669
  %671 = vmatprep.mubr.bf16.mxu0 %v226
  %672 = vmatmul.mubr.bf16.gmra.mrb[0].mxu0 %v225
  %v673 = vpop.f32.mrb[0].mxu0
  %v674 = vadd.f32 0.0, %v673
  %v675 = vpop.f32.mrb[0].mxu0
  %v676 = vadd.f32 0.0, %v675
  %v677 = vpop.f32.mrb[0].mxu0
  %v678 = vadd.f32 0.0, %v677
  %v679 = vpop.f32.mrb[0].mxu0
  %v680 = vadd.f32 0.0, %v679
  %681 = vmatprep.mubr.bf16.mxu0 %v230
  %682 = vmatmul.mubr.bf16.gmra.mrb[0].mxu0 %v229
  %v683 = vpop.f32.mrb[0].mxu0
  %v684 = vadd.f32 0.0, %v683
  %v685 = vpop.f32.mrb[0].mxu0
  %v686 = vadd.f32 0.0, %v685
  %v687 = vpop.f32.mrb[0].mxu0
  %v688 = vadd.f32 0.0, %v687
  %v689 = vpop.f32.mrb[0].mxu0
  %v690 = vadd.f32 0.0, %v689
  %691 = vmatprep.mubr.bf16.mxu0 %v234
  %692 = vmatmul.mubr.bf16.gmra.mrb[0].mxu0 %v233
  %v693 = vpop.f32.mrb[0].mxu0
  %v694 = vadd.f32 0.0, %v693
  %v695 = vpop.f32.mrb[0].mxu0
  %v696 = vadd.f32 0.0, %v695
  %v697 = vpop.f32.mrb[0].mxu0
  %v698 = vadd.f32 0.0, %v697
  %v699 = vpop.f32.mrb[0].mxu0
  %v700 = vadd.f32 0.0, %v699
  %701 = vdwg.mxu0
  %702 = vmatprep.subr.bf16.mxu0 %v494
  %703 = vmatpush1.bf16.msra.mxu0 %v493
  %704 = vmatprep.subr.bf16.mxu0 %v496
  %705 = vmatpush1.bf16.msra.mxu0 %v495
  %706 = vmatprep.subr.bf16.mxu0 %v498
  %707 = vmatpush1.bf16.msra.mxu0 %v497
  %708 = vmatprep.subr.bf16.mxu0 %v500
  %709 = vmatpush1.bf16.msra.mxu0 %v499
  %710 = vmatprep.subr.bf16.mxu0 %v502
  %711 = vmatpush1.bf16.msra.mxu0 %v501
  %712 = vmatprep.subr.bf16.mxu0 %v504
  %713 = vmatpush1.bf16.msra.mxu0 %v503
  %714 = vmatprep.subr.bf16.mxu0 %v506
  %715 = vmatpush1.bf16.msra.mxu0 %v505
  %716 = vmatprep.subr.bf16.mxu0 %v508
  %717 = vmatpush1.bf16.msra.mxu0 %v507
  %718 = vmatprep.subr.bf16.mxu0 %v510
  %719 = vmatpush1.bf16.msra.mxu0 %v509
  %720 = vmatprep.subr.bf16.mxu0 %v512
  %721 = vmatpush1.bf16.msra.mxu0 %v511
  %722 = vmatprep.subr.bf16.mxu0 %v514
  %723 = vmatpush1.bf16.msra.mxu0 %v513
  %724 = vmatprep.subr.bf16.mxu0 %v516
  %725 = vmatpush1.bf16.msra.mxu0 %v515
  %726 = vmatprep.subr.bf16.mxu0 %v518
  %727 = vmatpush1.bf16.msra.mxu0 %v517
  %728 = vmatprep.subr.bf16.mxu0 %v520
  %729 = vmatpush1.bf16.msra.mxu0 %v519
  %730 = vmatprep.subr.bf16.mxu0 %v522
  %731 = vmatpush1.bf16.msra.mxu0 %v521
  %732 = vmatprep.subr.bf16.mxu0 %v524
  %733 = vmatpush1.bf16.msra.mxu0 %v523
  %734 = vmatprep.mubr.bf16.mxu0 %v208
  %735 = vmatmul.mubr.bf16.gmra.mrb[0].mxu0 %v207
  %v736 = vpop.f32.mrb[0].mxu0
  %v737 = vadd.f32 %v624, %v736
  %v738 = vpop.f32.mrb[0].mxu0
  %v739 = vadd.f32 %v626, %v738
  %v740 = vpop.f32.mrb[0].mxu0
  %v741 = vadd.f32 %v628, %v740
  %v742 = vpop.f32.mrb[0].mxu0
  %v743 = vadd.f32 %v630, %v742
  %744 = vmatprep.mubr.bf16.mxu0 %v212
  %745 = vmatmul.mubr.bf16.gmra.mrb[0].mxu0 %v211
  %v746 = vpop.f32.mrb[0].mxu0
  %v747 = vadd.f32 %v634, %v746
  %v748 = vpop.f32.mrb[0].mxu0
  %v749 = vadd.f32 %v636, %v748
  %v750 = vpop.f32.mrb[0].mxu0
  %v751 = vadd.f32 %v638, %v750
  %v752 = vpop.f32.mrb[0].mxu0
  %v753 = vadd.f32 %v640, %v752
  %754 = vmatprep.mubr.bf16.mxu0 %v216
  %755 = vmatmul.mubr.bf16.gmra.mrb[0].mxu0 %v215
  %v756 = vpop.f32.mrb[0].mxu0
  %v757 = vadd.f32 %v644, %v756
  %v758 = vpop.f32.mrb[0].mxu0
  %v759 = vadd.f32 %v646, %v758
  %v760 = vpop.f32.mrb[0].mxu0
  %v761 = vadd.f32 %v648, %v760
  %v762 = vpop.f32.mrb[0].mxu0
  %v763 = vadd.f32 %v650, %v762
  %764 = vmatprep.mubr.bf16.mxu0 %v220
  %765 = vmatmul.mubr.bf16.gmra.mrb[0].mxu0 %v219
  %v766 = vpop.f32.mrb[0].mxu0
  %v767 = vadd.f32 %v654, %v766
  %v768 = vpop.f32.mrb[0].mxu0
  %v769 = vadd.f32 %v656, %v768
  %v770 = vpop.f32.mrb[0].mxu0
  %v771 = vadd.f32 %v658, %v770
  %v772 = vpop.f32.mrb[0].mxu0
  %v773 = vadd.f32 %v660, %v772
  %774 = vmatprep.mubr.bf16.mxu0 %v224
  %775 = vmatmul.mubr.bf16.gmra.mrb[0].mxu0 %v223
  %v776 = vpop.f32.mrb[0].mxu0
  %v777 = vadd.f32 %v664, %v776
  %v778 = vpop.f32.mrb[0].mxu0
  %v779 = vadd.f32 %v666, %v778
  %v780 = vpop.f32.mrb[0].mxu0
  %v781 = vadd.f32 %v668, %v780
  %v782 = vpop.f32.mrb[0].mxu0
  %v783 = vadd.f32 %v670, %v782
  %784 = vmatprep.mubr.bf16.mxu0 %v228
  %785 = vmatmul.mubr.bf16.gmra.mrb[0].mxu0 %v227
  %v786 = vpop.f32.mrb[0].mxu0
  %v787 = vadd.f32 %v674, %v786
  %v788 = vpop.f32.mrb[0].mxu0
  %v789 = vadd.f32 %v676, %v788
  %v790 = vpop.f32.mrb[0].mxu0
  %v791 = vadd.f32 %v678, %v790
  %v792 = vpop.f32.mrb[0].mxu0
  %v793 = vadd.f32 %v680, %v792
  %794 = vmatprep.mubr.bf16.mxu0 %v232
  %795 = vmatmul.mubr.bf16.gmra.mrb[0].mxu0 %v231
  %v796 = vpop.f32.mrb[0].mxu0
  %v797 = vadd.f32 %v684, %v796
  %v798 = vpop.f32.mrb[0].mxu0
  %v799 = vadd.f32 %v686, %v798
  %v800 = vpop.f32.mrb[0].mxu0
  %v801 = vadd.f32 %v688, %v800
  %v802 = vpop.f32.mrb[0].mxu0
  %v803 = vadd.f32 %v690, %v802
  %804 = vmatprep.mubr.bf16.mxu0 %v236
  %805 = vmatmul.mubr.bf16.gmra.mrb[0].mxu0 %v235
  %v806 = vpop.f32.mrb[0].mxu0
  %v807 = vadd.f32 %v694, %v806
  %v808 = vpop.f32.mrb[0].mxu0
  %v809 = vadd.f32 %v696, %v808
  %v810 = vpop.f32.mrb[0].mxu0
  %v811 = vadd.f32 %v698, %v810
  %v812 = vpop.f32.mrb[0].mxu0
  %v813 = vadd.f32 %v700, %v812
  %814 = vdwg.mxu0
  %815 = vst [vmem:[%s2] sm:$0xff] %v737
  %816 = vst [vmem:[%s2 + $0x8] sm:$0xff] %v739
  %817 = vst [vmem:[%s2 + $0x10] sm:$0xff] %v741
  %818 = vst [vmem:[%s2 + $0x18] sm:$0xff] %v743
  %819 = vst [vmem:[%s2 + $0x20] sm:$0xff] %v747
  %820 = vst [vmem:[%s2 + $0x28] sm:$0xff] %v749
  %821 = vst [vmem:[%s2 + $0x30] sm:$0xff] %v751
  %822 = vst [vmem:[%s2 + $0x38] sm:$0xff] %v753
  %823 = vst [vmem:[%s2 + $0x40] sm:$0xff] %v757
  %824 = vst [vmem:[%s2 + $0x48] sm:$0xff] %v759
  %825 = vst [vmem:[%s2 + $0x50] sm:$0xff] %v761
  %826 = vst [vmem:[%s2 + $0x58] sm:$0xff] %v763
  %827 = vst [vmem:[%s2 + $0x60] sm:$0xff] %v767
  %828 = vst [vmem:[%s2 + $0x68] sm:$0xff] %v769
  %829 = vst [vmem:[%s2 + $0x70] sm:$0xff] %v771
  %830 = vst [vmem:[%s2 + $0x78] sm:$0xff] %v773
  %831 = vst [vmem:[%s2 + $0x80] sm:$0xff] %v777
  %832 = vst [vmem:[%s2 + $0x88] sm:$0xff] %v779
  %833 = vst [vmem:[%s2 + $0x90] sm:$0xff] %v781
  %834 = vst [vmem:[%s2 + $0x98] sm:$0xff] %v783
  %835 = vst [vmem:[%s2 + $0xa0] sm:$0xff] %v787
  %836 = vst [vmem:[%s2 + $0xa8] sm:$0xff] %v789
  %837 = vst [vmem:[%s2 + $0xb0] sm:$0xff] %v791
  %838 = vst [vmem:[%s2 + $0xb8] sm:$0xff] %v793
  %839 = vst [vmem:[%s2 + $0xc0] sm:$0xff] %v797
  %840 = vst [vmem:[%s2 + $0xc8] sm:$0xff] %v799
  %841 = vst [vmem:[%s2 + $0xd0] sm:$0xff] %v801
  %842 = vst [vmem:[%s2 + $0xd8] sm:$0xff] %v803
  %843 = vst [vmem:[%s2 + $0xe0] sm:$0xff] %v807
  %844 = vst [vmem:[%s2 + $0xe8] sm:$0xff] %v809
  %845 = vst [vmem:[%s2 + $0xf0] sm:$0xff] %v811
  %846 = vst [vmem:[%s2 + $0xf8] sm:$0xff] %v813
  %v847 = vadd.f32 %v737, %v741
  %v848 = vadd.f32 %v847, %v747
  %v849 = vadd.f32 %v848, %v751
  %v850 = vadd.f32 %v849, %v757
  %v851 = vadd.f32 %v850, %v761
  %v852 = vadd.f32 %v851, %v767
  %v853 = vadd.f32 %v852, %v771
  %v854 = vadd.f32 %v853, %v777
  %v855 = vadd.f32 %v854, %v781
  %v856 = vadd.f32 %v855, %v787
  %v857 = vadd.f32 %v856, %v791
  %v858 = vadd.f32 %v857, %v797
  %v859 = vadd.f32 %v858, %v801
  %v860 = vadd.f32 %v859, %v807
  %v861 = vadd.f32 %v860, %v811
  %v862 = vrot.slane %v861, 4
  %v863 = vadd.f32 %v861, %v862
  %v864 = vrot.slane %v863, 2
  %v865 = vadd.f32 %v863, %v864
  %v866 = vrot.slane %v865, 1
  %v867 = vadd.f32 %v865, %v866
  %v868 = vadd.f32 %v739, %v743
  %v869 = vadd.f32 %v868, %v749
  %v870 = vadd.f32 %v869, %v753
  %v871 = vadd.f32 %v870, %v759
  %v872 = vadd.f32 %v871, %v763
  %v873 = vadd.f32 %v872, %v769
  %v874 = vadd.f32 %v873, %v773
  %v875 = vadd.f32 %v874, %v779
  %v876 = vadd.f32 %v875, %v783
  %v877 = vadd.f32 %v876, %v789
  %v878 = vadd.f32 %v877, %v793
  %v879 = vadd.f32 %v878, %v799
  %v880 = vadd.f32 %v879, %v803
  %v881 = vadd.f32 %v880, %v809
  %v882 = vadd.f32 %v881, %v813
  %v883 = vrot.slane %v882, 4
  %v884 = vadd.f32 %v882, %v883
  %v885 = vrot.slane %v884, 2
  %v886 = vadd.f32 %v884, %v885
  %v887 = vrot.slane %v886, 1
  %v888 = vadd.f32 %v886, %v887
  %v889 = vmul.f32 %v737, %v737
  %v890 = vmul.f32 %v739, %v739
  %v891 = vmul.f32 %v741, %v741
  %v892 = vmul.f32 %v743, %v743
  %v893 = vmul.f32 %v747, %v747
  %v894 = vmul.f32 %v749, %v749
  %v895 = vmul.f32 %v751, %v751
  %v896 = vmul.f32 %v753, %v753
  %v897 = vmul.f32 %v757, %v757
  %v898 = vmul.f32 %v759, %v759
  %v899 = vmul.f32 %v761, %v761
  %v900 = vmul.f32 %v763, %v763
  %v901 = vmul.f32 %v767, %v767
  %v902 = vmul.f32 %v769, %v769
  %v903 = vmul.f32 %v771, %v771
  %v904 = vmul.f32 %v773, %v773
  %v905 = vmul.f32 %v777, %v777
  %v906 = vmul.f32 %v779, %v779
  %v907 = vmul.f32 %v781, %v781
  %v908 = vmul.f32 %v783, %v783
  %v909 = vmul.f32 %v787, %v787
  %v910 = vmul.f32 %v789, %v789
  %v911 = vmul.f32 %v791, %v791
  %v912 = vmul.f32 %v793, %v793
  %v913 = vmul.f32 %v797, %v797
  %v914 = vmul.f32 %v799, %v799
  %v915 = vmul.f32 %v801, %v801
  %v916 = vmul.f32 %v803, %v803
  %v917 = vmul.f32 %v807, %v807
  %v918 = vmul.f32 %v809, %v809
  %v919 = vmul.f32 %v811, %v811
  %v920 = vmul.f32 %v813, %v813
  %v921 = vadd.f32 %v889, %v891
  %v922 = vadd.f32 %v921, %v893
  %v923 = vadd.f32 %v922, %v895
  %v924 = vadd.f32 %v923, %v897
  %v925 = vadd.f32 %v924, %v899
  %v926 = vadd.f32 %v925, %v901
  %v927 = vadd.f32 %v926, %v903
  %v928 = vadd.f32 %v927, %v905
  %v929 = vadd.f32 %v928, %v907
  %v930 = vadd.f32 %v929, %v909
  %v931 = vadd.f32 %v930, %v911
  %v932 = vadd.f32 %v931, %v913
  %v933 = vadd.f32 %v932, %v915
  %v934 = vadd.f32 %v933, %v917
  %v935 = vadd.f32 %v934, %v919
  %v936 = vrot.slane %v935, 4
  %v937 = vadd.f32 %v935, %v936
  %v938 = vrot.slane %v937, 2
  %v939 = vadd.f32 %v937, %v938
  %v940 = vrot.slane %v939, 1
  %v941 = vadd.f32 %v939, %v940
  %v942 = vadd.f32 %v890, %v892
  %v943 = vadd.f32 %v942, %v894
  %v944 = vadd.f32 %v943, %v896
  %v945 = vadd.f32 %v944, %v898
  %v946 = vadd.f32 %v945, %v900
  %v947 = vadd.f32 %v946, %v902
  %v948 = vadd.f32 %v947, %v904
  %v949 = vadd.f32 %v948, %v906
  %v950 = vadd.f32 %v949, %v908
  %v951 = vadd.f32 %v950, %v910
  %v952 = vadd.f32 %v951, %v912
  %v953 = vadd.f32 %v952, %v914
  %v954 = vadd.f32 %v953, %v916
  %v955 = vadd.f32 %v954, %v918
  %v956 = vadd.f32 %v955, %v920
  %v957 = vrot.slane %v956, 4
  %v958 = vadd.f32 %v956, %v957
  %v959 = vrot.slane %v958, 2
  %v960 = vadd.f32 %v958, %v959
  %v961 = vrot.slane %v960, 1
  %v962 = vadd.f32 %v960, %v961
  %v963 = vlaneseq
  %v964 = vshrl.u32 %v963, 7
  %vm965 = vcmp.eq.s32.totalorder %v964, 0
  %vm966 = vcmp.eq.s32.totalorder %v964, 1
  %v967 = vsel %vm966, %v941, 0.0
  %v968 = vsel %vm966, %v962, 0.0
  %v969 = vsel %vm965, %v867, %v967
  %v970 = vsel %vm965, %v888, %v968
  %971 = vst [vmem:[%s3] sm:$0xff] %v969
  %972 = vst [vmem:[%s3 + $0x8] sm:$0xff] %v970
  // Predicated region
  $region10: #{conv_block_forward.2} parent=0 // pred_check
    _
  $region11: #{conv_block_forward.2} parent=0 // pred_check_branch
    %974 = sbr.rel (0) target = $region13
  $region12: #{conv_block_forward.2} parent=0 // pred_region
    _
  $region13: #{conv_block_forward.2} parent=0 // pred_fallthru
    _
  // Predicated region
  $region14: #{conv_block_forward.2} parent=0 // pred_check
    _
  $region15: #{conv_block_forward.2} parent=0 // pred_check_branch
    %976 = sbr.rel (0) target = $region17
  $region16: #{conv_block_forward.2} parent=0 // pred_region
    _
  $region17: #{conv_block_forward.2} parent=0 // pred_fallthru
    _
  // Predicated region
  $region18: #{conv_block_forward.2} parent=0 // pred_check
    _
  $region19: #{conv_block_forward.2} parent=0 // pred_check_branch
    %978 = sbr.rel (0) target = $region21
  $region20: #{conv_block_forward.2} parent=0 // pred_region
    _
  $region21: #{conv_block_forward.2} parent=0 // pred_fallthru
    _
  // Predicated region
  $region22: #{conv_block_forward.2} parent=0 // pred_check
    _
  $region23: #{conv_block_forward.2} parent=0 // pred_check_branch
    %980 = sbr.rel (0) target = $region25
  $region24: #{conv_block_forward.2} parent=0 // pred_region
    _
  $region25: #{conv_block_forward.2} parent=0 // pred_fallthru
    _

</llo_original>
